<compile_context>
chip_gen: v5e
topology: v5e:2x2
jax: 0.10.0
libtpu: 0.0.40
codegen_flags: <defaults>
</compile_context>

<pallas_src>
import functools

import jax
import jax.numpy as jnp
from jax import lax
from jax.experimental import pallas as pl
from jax.experimental.pallas import tpu as pltpu

_VMEM = pltpu.MemorySpace.VMEM


# ------------------------------ Pallas kernel ------------------------------- #

def merge_fused_kernel(z_ref, w1_ref, b1_ref, w2_ref, b2_ref, y_ref,
                       keep_ref, ym_ref, adj_ref, *, n_keep):
    """Fused proj / similarity / keep-selection / merge / adjacency.

    Outputs:
      keep_ref : (B,1) f32, 1.0 for rows that keep their original values
                 (== reference `indices_comp`, the B-merge_num smallest z_sim,
                 ties broken toward lower index like lax.top_k on -z_sim)
      ym_ref   : (B,1) f32, merged y
      adj_ref  : (B,B) f32, cosine-similarity adjacency of z_merge
    """
    z = z_ref[...]                                          # (B, 2H) f32
    B = z.shape[0]

    # --- proj MLP: Linear(2H->H) -> ReLU -> Linear(H->H); bf16 in / f32 acc --
    h = jnp.dot(z.astype(jnp.bfloat16), w1_ref[...],
                preferred_element_type=jnp.float32) + b1_ref[...]
    h = jnp.maximum(h, 0.0)
    zp = jnp.dot(h.astype(jnp.bfloat16), w2_ref[...],
                 preferred_element_type=jnp.float32) + b2_ref[...]   # (B, H)

    # --- z_sim[b] = <zp[b], zp[(b+1)%B]>,  z_sim[B-1] := -1e8 ----------------
    zp_roll = pltpu.roll(zp, B - 1, 0)                      # row b <- row b+1
    prod = zp * zp_roll                                     # (B, H)

    # column layout via XLU lane-reduce
    zsim_col = jnp.sum(prod, axis=-1, keepdims=True)        # (B, 1)
    row_i = lax.broadcasted_iota(jnp.int32, (B, 1), 0)
    zsim_col = jnp.where(row_i == B - 1, -100000000.0, zsim_col)

    # lane-major layout via ones-vector contraction on the MXU
    ones_h = jnp.ones((1, prod.shape[1]), jnp.float32)
    zsim_row = lax.dot_general(ones_h, prod, (((1,), (1,)), ((), ())),
                               preferred_element_type=jnp.float32)   # (1, B)
    col_i = lax.broadcasted_iota(jnp.int32, (1, B), 1)
    zsim_row = jnp.where(col_i == B - 1, -100000000.0, zsim_row)

    # --- keep selection: b kept iff it is among the n_keep smallest z_sim ----
    # rank[b] = #{ j != b : z_sim[j] < z_sim[b]  or (tie and j < b) }
    # (diagonal excluded explicitly: row/col z_sim come from different
    #  reduction orders and may differ in the last ulp)
    bi = lax.broadcasted_iota(jnp.int32, (B, B), 0)         # row index b
    ji = lax.broadcasted_iota(jnp.int32, (B, B), 1)         # col index j
    beats = (ji != bi) & ((zsim_row < zsim_col) |
                          ((zsim_row == zsim_col) & (ji < bi)))
    rank = jnp.sum(beats.astype(jnp.float32), axis=-1, keepdims=True)  # (B,1)
    keep = (rank < float(n_keep)).astype(jnp.float32)                  # (B,1)
    keep_ref[...] = keep

    # --- y_merge = min(y, roll(y,-1)) except kept rows -----------------------
    y = y_ref[...]                                          # (B, 1)
    y_roll = pltpu.roll(y, B - 1, 0)                        # sublane rotate
    ym_ref[...] = jnp.where(keep > 0, y, jnp.minimum(y, y_roll))

    # --- z_merge + cosine adjacency (f32 MXU: single pass at this size) ------
    z_roll = pltpu.roll(z, B - 1, 0)
    z_merge = jnp.where(keep > 0, z, (z + z_roll) * 0.5)
    sumsq = jnp.sum(z_merge * z_merge, axis=-1, keepdims=True)
    # F.normalize(dim=-1, eps=1e-12): clamp the squared norm at eps^2
    zn = z_merge * lax.rsqrt(jnp.maximum(sumsq, 1e-24))
    adj_ref[...] = lax.dot_general(zn, zn, (((1,), (1,)), ((), ())),
                                   preferred_element_type=jnp.float32)


# ------------------------------ Pallas wrapper ------------------------------ #

def fused_merge(z, y, w1, b1, w2, b2, n_keep):
    B, _ = z.shape
    # TODO(synk): when B scales to thousands, tile adj with a 2-D grid
    # (<=512x512 f32 output blocks, (TB,2H) row/col input blocks with TB a
    # multiple of 128 on v5e / 256 on v6e-v7x), mark the row-tile axis
    # "parallel" for v7x's 2 TensorCores, set vmem_limit_bytes per generation
    # (v7x has only 64 MiB physical VMEM), and fuse the per-row top-(k+1) so
    # the full (B,B) adjacency never round-trips HBM.
    keep, ym, adj = pl.pallas_call(
        functools.partial(merge_fused_kernel, n_keep=n_keep),
        out_shape=(jax.ShapeDtypeStruct((B, 1), jnp.float32),
                   jax.ShapeDtypeStruct((B, 1), jnp.float32),
                   jax.ShapeDtypeStruct((B, B), jnp.float32)),
        in_specs=[pl.BlockSpec(memory_space=_VMEM)] * 6,
        out_specs=(pl.BlockSpec(memory_space=_VMEM),
                   pl.BlockSpec(memory_space=_VMEM),
                   pl.BlockSpec(memory_space=_VMEM)),
    )(z, w1, b1, w2, b2, y[:, None])
    return keep, ym[:, 0], adj


# ------------------------------ plain-JAX glue ------------------------------ #

def merge_x(x, x_mask, keep_col, subseq_len):
    B, L = x.shape
    x_roll = jnp.roll(x, -1, axis=0)
    x_mask_roll = jnp.roll(x_mask, -1, axis=0)
    x_merge = jnp.concatenate([x, x_roll], axis=1)
    # (x_mask_clip with sliding_wdw is dead code in the reference forward)
    x_mask_merge = jnp.concatenate([x_mask, x_mask_roll], axis=1)
    zero_cols = jnp.arange(2 * L) >= (2 * L - subseq_len)
    x_mask_merge = jnp.where((keep_col > 0) & zero_cols[None, :],
                             0.0, x_mask_merge)
    # torch stable descending sort by mask + gather of both tensors, as one
    # fused multi-operand stable ascending sort on the negated key.
    _, x_merge, x_mask_merge = jax.lax.sort(
        (-x_mask_merge, x_merge, x_mask_merge), dimension=-1,
        is_stable=True, num_keys=1)
    return x_merge, x_mask_merge


@functools.partial(jax.jit,
                   static_argnames=("sliding_wdw", "merge_thred",
                                    "subseq_len", "k"))
def merge_forward(params, z, x, y, x_mask, temporal_graph, sliding_wdw,
                  merge_thred=0.5, subseq_len=16, k=3):
    B = z.shape[0]
    merge_num = int(B * merge_thred)

    # --- fused proj + similarity + keep-selection + y/z merge + adjacency ----
    keep_col, y_merge, adj = fused_merge(
        z, y, params["w1"], params["b1"], params["w2"], params["b2"],
        n_keep=B - merge_num)

    # --- merge x (stable-sort compaction, plain JAX) --------------------------
    x_merge, x_merge_mask = merge_x(x, x_mask, keep_col, subseq_len)

    # --- kNN over adjacency (self-edge dropped like the reference) ------------
    # TODO(synk): at large B fuse this per-row top-(k+1) into the kernel.
    vals, idx = jax.lax.top_k(adj, k + 1)
    dist = vals[..., 1:]
    idx = idx[..., 1:]

    # --- build graphs (torch_geometric.data.Data -> plain dicts) --------------
    idx_source = jnp.repeat(jnp.arange(B, dtype=jnp.int32), k)
    idx_target = idx.reshape(-1).astype(jnp.int32)
    edge_index = jnp.stack([idx_source, idx_target], axis=0)
    edge_attr = dist.reshape(-1)[:, None]
    semantic_graph = dict(x=x_merge, edge_index=edge_index,
                          edge_attr=edge_attr, y=y_merge)
    new_temporal_graph = dict(x=x_merge,
                              edge_index=temporal_graph["edge_index"],
                              edge_attr=temporal_graph["edge_attr"],
                              y=y_merge)
    return semantic_graph, new_temporal_graph, x_merge_mask


# --------------------------------- driver ----------------------------------- #

if __name__ == "__main__":
    B, H, L, K = 8, 32, 16, 3          # batch, hidden_dim, subseq_len, k
    sliding_wdw = 8
    merge_thred = 0.5

    key = jax.random.PRNGKey(0)
    ks = jax.random.split(key, 8)

    # inputs
    z = jax.random.normal(ks[0], (B, 2 * H), jnp.float32)
    x = jax.random.normal(ks[1], (B, L), jnp.float32)
    y = jax.random.normal(ks[2], (B,), jnp.float32)
    x_mask = (jax.random.uniform(ks[3], (B, L)) > 0.3).astype(jnp.float32)

    # parameters for proj = Linear(2H->H) -> ReLU -> Linear(H->H)
    # (weights pre-cast to bf16 once; biases stay f32)
    params = dict(
        w1=(jax.random.normal(ks[4], (2 * H, H), jnp.float32)
            / jnp.sqrt(2.0 * H)).astype(jnp.bfloat16),
        b1=jax.random.normal(ks[5], (1, H), jnp.float32) * 0.01,
        w2=(jax.random.normal(ks[6], (H, H), jnp.float32)
            / jnp.sqrt(1.0 * H)).astype(jnp.bfloat16),
        b2=jax.random.normal(ks[7], (1, H), jnp.float32) * 0.01,
    )

    # simple chain temporal graph
    src = jnp.arange(B - 1, dtype=jnp.int32)
    temporal_graph = dict(x=x,
                          edge_index=jnp.stack([src, src + 1], axis=0),
                          edge_attr=jnp.ones((B - 1, 1), jnp.float32),
                          y=y)

    sem_g, temp_g, x_merge_mask = merge_forward(
        params, z, x, y, x_mask, temporal_graph,
        sliding_wdw=sliding_wdw, merge_thred=merge_thred,
        subseq_len=L, k=K)

    jax.block_until_ready((sem_g, temp_g, x_merge_mask))
    print("KERNEL_OK")
</pallas_src>

<mosaic_0001>
module attributes {stable_mosaic.version = 11 : i64} {
  func.func @merge_fused_kernel(%arg0: memref<8x64xf32, #tpu.memory_space<vmem>>, %arg1: memref<64x32xbf16, #tpu.memory_space<vmem>>, %arg2: memref<1x32xf32, #tpu.memory_space<vmem>>, %arg3: memref<32x32xbf16, #tpu.memory_space<vmem>>, %arg4: memref<1x32xf32, #tpu.memory_space<vmem>>, %arg5: memref<8x1xf32, #tpu.memory_space<vmem>>, %arg6: memref<8x1xf32, #tpu.memory_space<vmem>>, %arg7: memref<8x1xf32, #tpu.memory_space<vmem>>, %arg8: memref<8x8xf32, #tpu.memory_space<vmem>>) attributes {dimension_semantics = [], scalar_prefetch = 0 : i64, scratch_operands = 0 : i64, tpu.core_type = #tpu.core_type<tc>} {
    %c0 = arith.constant 0 : index
    %c0_0 = arith.constant 0 : index
    %0 = vector.load %arg0[%c0, %c0_0] : memref<8x64xf32, #tpu.memory_space<vmem>>, vector<8x64xf32>
    %1 = arith.truncf %0 : vector<8x64xf32> to vector<8x64xbf16>
    %c0_1 = arith.constant 0 : index
    %c0_2 = arith.constant 0 : index
    %2 = vector.load %arg1[%c0_1, %c0_2] : memref<64x32xbf16, #tpu.memory_space<vmem>>, vector<64x32xbf16>
    %cst = arith.constant dense<0.000000e+00> : vector<8x32xf32>
    %3 = tpu.matmul %1, %2, %cst {dimension_numbers = #tpu.dot_dimension_numbers<[1], [0], [0], [1], [0, 0, 1, 1], [], []>} : vector<8x64xbf16>, vector<64x32xbf16>, vector<8x32xf32> -> vector<8x32xf32>
    %c0_3 = arith.constant 0 : index
    %c0_4 = arith.constant 0 : index
    %4 = vector.load %arg2[%c0_3, %c0_4] : memref<1x32xf32, #tpu.memory_space<vmem>>, vector<1x32xf32>
    %5 = vector.broadcast %4 : vector<1x32xf32> to vector<8x32xf32>
    %6 = arith.addf %3, %5 : vector<8x32xf32>
    %cst_5 = arith.constant 0.000000e+00 : f32
    %7 = vector.broadcast %cst_5 : f32 to vector<8x32xf32>
    %8 = arith.maximumf %6, %7 : vector<8x32xf32>
    %9 = arith.truncf %8 : vector<8x32xf32> to vector<8x32xbf16>
    %c0_6 = arith.constant 0 : index
    %c0_7 = arith.constant 0 : index
    %10 = vector.load %arg3[%c0_6, %c0_7] : memref<32x32xbf16, #tpu.memory_space<vmem>>, vector<32x32xbf16>
    %cst_8 = arith.constant dense<0.000000e+00> : vector<8x32xf32>
    %11 = tpu.matmul %9, %10, %cst_8 {dimension_numbers = #tpu.dot_dimension_numbers<[1], [0], [0], [1], [0, 0, 1, 1], [], []>} : vector<8x32xbf16>, vector<32x32xbf16>, vector<8x32xf32> -> vector<8x32xf32>
    %c0_9 = arith.constant 0 : index
    %c0_10 = arith.constant 0 : index
    %12 = vector.load %arg4[%c0_9, %c0_10] : memref<1x32xf32, #tpu.memory_space<vmem>>, vector<1x32xf32>
    %13 = vector.broadcast %12 : vector<1x32xf32> to vector<8x32xf32>
    %14 = arith.addf %11, %13 : vector<8x32xf32>
    %c7_i32 = arith.constant 7 : i32
    %15 = tpu.dynamic_rotate %14 by %c7_i32 dim 0 : vector<8x32xf32>, i32 -> vector<8x32xf32>
    %16 = arith.mulf %14, %15 : vector<8x32xf32>
    %cst_11 = arith.constant dense<0.000000e+00> : vector<8xf32>
    %17 = vector.multi_reduction <add>, %16, %cst_11 [1] : vector<8x32xf32> to vector<8xf32>
    %18 = vector.shape_cast %17 : vector<8xf32> to vector<8x1xf32>
    %19 = tpu.iota {dimensions = array<i32: 0>} : vector<8x1xi32>
    %c7_i32_12 = arith.constant 7 : i32
    %20 = vector.broadcast %c7_i32_12 : i32 to vector<8x1xi32>
    %21 = arith.cmpi eq, %19, %20 : vector<8x1xi32>
    %cst_13 = arith.constant -1.000000e+08 : f32
    %22 = vector.broadcast %cst_13 : f32 to vector<8x1xf32>
    %23 = arith.select %21, %22, %18 : vector<8x1xi1>, vector<8x1xf32>
    %cst_14 = arith.constant 1.000000e+00 : f32
    %24 = vector.broadcast %cst_14 : f32 to vector<1x32xf32>
    %cst_15 = arith.constant dense<0.000000e+00> : vector<1x8xf32>
    %25 = tpu.matmul %24, %16, %cst_15 {dimension_numbers = #tpu.dot_dimension_numbers<[1], [1], [0], [0], [0, 0, 1, 0], [], []>} : vector<1x32xf32>, vector<8x32xf32>, vector<1x8xf32> -> vector<1x8xf32>
    %26 = tpu.iota {dimensions = array<i32: 1>} : vector<1x8xi32>
    %c7_i32_16 = arith.constant 7 : i32
    %27 = vector.broadcast %c7_i32_16 : i32 to vector<1x8xi32>
    %28 = arith.cmpi eq, %26, %27 : vector<1x8xi32>
    %cst_17 = arith.constant -1.000000e+08 : f32
    %29 = vector.broadcast %cst_17 : f32 to vector<1x8xf32>
    %30 = arith.select %28, %29, %25 : vector<1x8xi1>, vector<1x8xf32>
    %31 = tpu.iota {dimensions = array<i32: 0>} : vector<8x8xi32>
    %32 = tpu.iota {dimensions = array<i32: 1>} : vector<8x8xi32>
    %33 = arith.cmpi ne, %32, %31 : vector<8x8xi32>
    %34 = vector.broadcast %30 : vector<1x8xf32> to vector<8x8xf32>
    %35 = vector.broadcast %23 : vector<8x1xf32> to vector<8x8xf32>
    %36 = arith.cmpf olt, %34, %35 : vector<8x8xf32>
    %37 = vector.broadcast %30 : vector<1x8xf32> to vector<8x8xf32>
    %38 = vector.broadcast %23 : vector<8x1xf32> to vector<8x8xf32>
    %39 = arith.cmpf oeq, %37, %38 : vector<8x8xf32>
    %40 = arith.cmpi slt, %32, %31 : vector<8x8xi32>
    %41 = arith.andi %39, %40 : vector<8x8xi1>
    %42 = arith.ori %36, %41 : vector<8x8xi1>
    %43 = arith.andi %33, %42 : vector<8x8xi1>
    %44 = arith.extui %43 : vector<8x8xi1> to vector<8x8xi32>
    %45 = arith.sitofp %44 : vector<8x8xi32> to vector<8x8xf32>
    %cst_18 = arith.constant dense<0.000000e+00> : vector<8xf32>
    %46 = vector.multi_reduction <add>, %45, %cst_18 [1] : vector<8x8xf32> to vector<8xf32>
    %47 = vector.shape_cast %46 : vector<8xf32> to vector<8x1xf32>
    %cst_19 = arith.constant 4.000000e+00 : f32
    %48 = vector.broadcast %cst_19 : f32 to vector<8x1xf32>
    %49 = arith.cmpf olt, %47, %48 : vector<8x1xf32>
    %50 = arith.extui %49 : vector<8x1xi1> to vector<8x1xi32>
    %51 = arith.sitofp %50 : vector<8x1xi32> to vector<8x1xf32>
    %c0_20 = arith.constant 0 : index
    %c0_21 = arith.constant 0 : index
    %52 = vector.load %arg6[%c0_20, %c0_21] : memref<8x1xf32, #tpu.memory_space<vmem>>, vector<8x1xf32>
    tpu.vector_store %arg6[%c0_20, %c0_21], %51 {strides = array<i32>} : memref<8x1xf32, #tpu.memory_space<vmem>>, vector<8x1xf32>,
    %c0_22 = arith.constant 0 : index
    %c0_23 = arith.constant 0 : index
    %53 = vector.load %arg5[%c0_22, %c0_23] : memref<8x1xf32, #tpu.memory_space<vmem>>, vector<8x1xf32>
    %c7_i32_24 = arith.constant 7 : i32
    %54 = tpu.dynamic_rotate %53 by %c7_i32_24 dim 0 : vector<8x1xf32>, i32 -> vector<8x1xf32>
    %cst_25 = arith.constant 0.000000e+00 : f32
    %55 = vector.broadcast %cst_25 : f32 to vector<8x1xf32>
    %56 = arith.cmpf ogt, %51, %55 : vector<8x1xf32>
    %57 = arith.minimumf %53, %54 : vector<8x1xf32>
    %58 = arith.select %56, %53, %57 : vector<8x1xi1>, vector<8x1xf32>
    %c0_26 = arith.constant 0 : index
    %c0_27 = arith.constant 0 : index
    %59 = vector.load %arg7[%c0_26, %c0_27] : memref<8x1xf32, #tpu.memory_space<vmem>>, vector<8x1xf32>
    tpu.vector_store %arg7[%c0_26, %c0_27], %58 {strides = array<i32>} : memref<8x1xf32, #tpu.memory_space<vmem>>, vector<8x1xf32>,
    %c7_i32_28 = arith.constant 7 : i32
    %60 = tpu.dynamic_rotate %0 by %c7_i32_28 dim 0 : vector<8x64xf32>, i32 -> vector<8x64xf32>
    %cst_29 = arith.constant 0.000000e+00 : f32
    %61 = vector.broadcast %cst_29 : f32 to vector<8x1xf32>
    %62 = arith.cmpf ogt, %51, %61 : vector<8x1xf32>
    %63 = arith.addf %0, %60 : vector<8x64xf32>
    %cst_30 = arith.constant 5.000000e-01 : f32
    %64 = vector.broadcast %cst_30 : f32 to vector<8x64xf32>
    %65 = arith.mulf %63, %64 : vector<8x64xf32>
    %66 = vector.shape_cast %62 : vector<8x1xi1> to vector<8x1xi1>
    %67 = vector.broadcast %66 : vector<8x1xi1> to vector<8x64xi1>
    %68 = arith.select %67, %0, %65 : vector<8x64xi1>, vector<8x64xf32>
    %69 = arith.mulf %68, %68 : vector<8x64xf32>
    %cst_31 = arith.constant dense<0.000000e+00> : vector<8xf32>
    %70 = vector.multi_reduction <add>, %69, %cst_31 [1] : vector<8x64xf32> to vector<8xf32>
    %71 = vector.shape_cast %70 : vector<8xf32> to vector<8x1xf32>
    %cst_32 = arith.constant 1.000000e-24 : f32
    %72 = vector.broadcast %cst_32 : f32 to vector<8x1xf32>
    %73 = arith.maximumf %71, %72 : vector<8x1xf32>
    %74 = math.rsqrt %73 : vector<8x1xf32>
    %75 = vector.broadcast %74 : vector<8x1xf32> to vector<8x64xf32>
    %76 = arith.mulf %68, %75 : vector<8x64xf32>
    %cst_33 = arith.constant dense<0.000000e+00> : vector<8x8xf32>
    %77 = tpu.matmul %76, %76, %cst_33 {dimension_numbers = #tpu.dot_dimension_numbers<[1], [1], [0], [0], [0, 0, 1, 0], [], []>} : vector<8x64xf32>, vector<8x64xf32>, vector<8x8xf32> -> vector<8x8xf32>
    %c0_34 = arith.constant 0 : index
    %c0_35 = arith.constant 0 : index
    %78 = vector.load %arg8[%c0_34, %c0_35] : memref<8x8xf32, #tpu.memory_space<vmem>>, vector<8x8xf32>
    tpu.vector_store %arg8[%c0_34, %c0_35], %77 {strides = array<i32>} : memref<8x8xf32, #tpu.memory_space<vmem>>, vector<8x8xf32>,
    return
  }
}

</mosaic_0001>

<llo_original>
// kernel: merge_forward.1
$region0: #{merge_forward.1}
  #allocation0 [shape = 'u32[]', space=smem, size = 0x4, offset = 0x4, fixed_abs, tag = 'smem constant byte address 0x4 - core index']
  #allocation1 [shape = 'u32[72,128]{1,0:T(1,128)}', space=vmem, size = 0x9000, scoped, tag = 'internal scratch']
  %s0 = inlined_call_operand.vmem [shape: f32[8,64], index: 0, kind: input, shape index: {}]
  %s1 = inlined_call_operand.vmem [shape: bf16[64,32], index: 1, kind: input, shape index: {}]
  %s2 = inlined_call_operand.vmem [shape: f32[1,32], index: 2, kind: input, shape index: {}]
  %s3 = inlined_call_operand.vmem [shape: bf16[32,32], index: 3, kind: input, shape index: {}]
  %s4 = inlined_call_operand.vmem [shape: f32[1,32], index: 4, kind: input, shape index: {}]
  %s5 = inlined_call_operand.vmem [shape: f32[8,1], index: 5, kind: input, shape index: {}]
  %s6 = inlined_call_operand.vmem [shape: f32[8,1], index: 6, kind: output, shape index: {0}]
  %s7 = inlined_call_operand.vmem [shape: f32[8,1], index: 7, kind: output, shape index: {1}]
  %s8 = inlined_call_operand.vmem [shape: f32[8,8], index: 8, kind: output, shape index: {2}]
  %9 = xla_tuple %s6, %s7, %s8
  %s10 = sld [smem:[#allocation0]]
  $region50: #{merge_forward.1} parent=0
    _
  %s12 = ssub.s32 1, %s10
  %s13 = scalar_select 0, %s12, %s10
  // Predicated region
  $region2: #{merge_forward.1} parent=0 // pred_check
    _
  $region3: #{merge_forward.1} parent=0 // pred_check_branch
    %15 = sbr.rel (0) target = $region5
  $region4: #{merge_forward.1} parent=0 // pred_region
    _
  $region5: #{merge_forward.1} parent=0 // pred_fallthru
    _
  // Predicated region
  $region6: #{merge_forward.1} parent=0 // pred_check
    _
  $region7: #{merge_forward.1} parent=0 // pred_check_branch
    %17 = sbr.rel (0) target = $region9
  $region8: #{merge_forward.1} parent=0 // pred_region
    _
  $region9: #{merge_forward.1} parent=0 // pred_fallthru
    _
  // Predicated region
  $region10: #{merge_forward.1} parent=0 // pred_check
    _
  $region11: #{merge_forward.1} parent=0 // pred_check_branch
    %19 = sbr.rel (0) target = $region13
  $region12: #{merge_forward.1} parent=0 // pred_region
    _
  $region13: #{merge_forward.1} parent=0 // pred_fallthru
    _
  // Predicated region
  $region14: #{merge_forward.1} parent=0 // pred_check
    _
  $region15: #{merge_forward.1} parent=0 // pred_check_branch
    %21 = sbr.rel (0) target = $region17
  $region16: #{merge_forward.1} parent=0 // pred_region
    _
  $region17: #{merge_forward.1} parent=0 // pred_fallthru
    _
  // Predicated region
  $region18: #{merge_forward.1} parent=0 // pred_check
    _
  $region19: #{merge_forward.1} parent=0 // pred_check_branch
    %23 = sbr.rel (0) target = $region21
  $region20: #{merge_forward.1} parent=0 // pred_region
    _
  $region21: #{merge_forward.1} parent=0 // pred_fallthru
    _
  // Predicated region
  $region22: #{merge_forward.1} parent=0 // pred_check
    _
  $region23: #{merge_forward.1} parent=0 // pred_check_branch
    %25 = sbr.rel (0) target = $region25
  $region24: #{merge_forward.1} parent=0 // pred_region
    _
  $region25: #{merge_forward.1} parent=0 // pred_fallthru
    _
  %v27 = vld [vmem:[%s0] sm:$0xff]
  %v28 = vpack.c.bf16 %v27, %v27
  %v29 = vld [vmem:[%s1] sm:$0xf]
  %v30 = vld [vmem:[%s1 + $0x4] sm:$0xf]
  %v31 = vld [vmem:[%s1 + $0x8] sm:$0xf]
  %v32 = vld [vmem:[%s1 + $0xc] sm:$0xf]
  %v33 = vld [vmem:[%s1 + $0x10] sm:$0xf]
  %v34 = vld [vmem:[%s1 + $0x14] sm:$0xf]
  %v35 = vld [vmem:[%s1 + $0x18] sm:$0xf]
  %v36 = vld [vmem:[%s1 + $0x1c] sm:$0xf]
  %v37 = vld [vmem:[%s2] sm:$0x1]
  %v39 = vperm.slane %v37, 0
  %v49 = vunpack.c.l.b16 %v29
  %v50 = vunpack.c.l.b16 %v30
  %v51 = vunpack.c.l.b16 %v31
  %v52 = vunpack.c.l.b16 %v32
  %v53 = vunpack.c.l.b16 %v33
  %v54 = vunpack.c.l.b16 %v34
  %v55 = vunpack.c.l.b16 %v35
  %v56 = vunpack.c.l.b16 %v36
  %v57 = vpack.c.b16 %v50, %v49
  %v58 = vpack.c.b16 %v52, %v51
  %v59 = vpack.c.b16 %v54, %v53
  %v60 = vpack.c.b16 %v56, %v55
  %vm65 = vcmask 523264
  %v67 = vsel %vm65, %v28, 0
  %69 = vmatpush.bf16.msra.mxu0 0
  %70 = vmatpush.bf16.msra.mxu0 0
  %71 = vmatpush.bf16.msra.mxu0 0
  %72 = vmatpush.bf16.msra.mxu0 0
  %73 = vmatpush.bf16.msra.mxu0 %v60
  %74 = vmatpush.bf16.msra.mxu0 %v59
  %75 = vmatpush.bf16.msra.mxu0 %v58
  %76 = vmatpush.bf16.msra.mxu0 %v57
  %77 = vmatmul.bf16.gmra.mxu0 %v67
  %v78 = vpop.f32.mrf.mxu0
  %v79 = vadd.f32 %v39, %v78
  %v80 = vpop.f32.mrf.mxu0
  %81 = vdwg.mxu0
  %v82 = vmax.f32 %v79, 0.0
  %v83 = vpack.c.bf16 %v82, %v82
  %v84 = vld [vmem:[%s3] sm:$0xf]
  %v85 = vld [vmem:[%s3 + $0x4] sm:$0xf]
  %v86 = vld [vmem:[%s3 + $0x8] sm:$0xf]
  %v87 = vld [vmem:[%s3 + $0xc] sm:$0xf]
  %v88 = vld [vmem:[%s4] sm:$0x1]
  %v90 = vperm.slane %v88, 0
  %v96 = vunpack.c.l.b16 %v84
  %v97 = vunpack.c.l.b16 %v85
  %v98 = vunpack.c.l.b16 %v86
  %v99 = vunpack.c.l.b16 %v87
  %v100 = vpack.c.b16 %v97, %v96
  %v101 = vpack.c.b16 %v99, %v98
  %vm104 = vcmask 261120
  %v106 = vsel %vm104, %v83, 0
  %108 = vmatpush.bf16.msra.mxu0 0
  %109 = vmatpush.bf16.msra.mxu0 0
  %110 = vmatpush.bf16.msra.mxu0 0
  %111 = vmatpush.bf16.msra.mxu0 0
  %112 = vmatpush.bf16.msra.mxu0 0
  %113 = vmatpush.bf16.msra.mxu0 0
  %114 = vmatpush.bf16.msra.mxu0 %v101
  %115 = vmatpush.bf16.msra.mxu0 %v100
  %116 = vmatmul.bf16.gmra.mxu0 %v106
  %v117 = vpop.f32.mrf.mxu0
  %v118 = vadd.f32 %v90, %v117
  %v119 = vpop.f32.mrf.mxu0
  %120 = vdwg.mxu0
  %v121 = vrot.slane %v118, 1
  %v122 = vmul.f32 %v118, %v121
  %v123 = vsel %vm104, %v122, 0.0
  %124 = vadd.xlane.f32.xlu0 %v123
  %v125 = vpop.xlane.xlu0 %124
  %v126 = vlaneseq
  %v127 = vshrl.u32 %v126, 7
  %vm128 = vcmp.eq.s32.totalorder %v127, 7
  %v129 = vsel %vm128, -1e+08, %v125
  %v131 = vsel %vm104, 1.0, 0
  %v134 = vsel %vm104, %v122, 0
  %136 = vmatpush.xpose.msra.mxu0 0.0
  %137 = vmatpush.xpose.msra.mxu0 0.0
  %138 = vmatpush.xpose.msra.mxu0 0.0
  %139 = vmatpush.xpose.msra.mxu0 0.0
  %140 = vmatpush.xpose.msra.mxu0 0.0
  %141 = vmatpush.xpose.msra.mxu0 0.0
  %142 = vmatpush.xpose.msra.mxu0 0.0
  %143 = vmatpush.xpose.msra.mxu0 0.0
  %144 = vmatpush.xpose.msra.mxu0 0.0
  %145 = vmatpush.xpose.msra.mxu0 0.0
  %146 = vmatpush.xpose.msra.mxu0 0.0
  %147 = vmatpush.xpose.msra.mxu0 0.0
  %148 = vmatpush.xpose.msra.mxu0 0.0
  %149 = vmatpush.xpose.msra.mxu0 0.0
  %150 = vmatpush.xpose.msra.mxu0 0.0
  %151 = vmatpush.xpose.msra.mxu0 %v134
  %152 = vmatmul.f32.gmra.mxu0 %v131
  %v153 = vpop.f32.mrf.mxu0
  %v154 = vadd.f32 0.0, %v153
  %155 = vdwg.mxu0
  %v156 = vlaneseq
  %v157 = vand.u32 %v156, 127
  %vm158 = vcmp.eq.s32.totalorder %v157, 7
  %v159 = vsel %vm158, -1e+08, %v154
  %vm160 = vcmp.ne.s32.totalorder %v157, %v127
  %v161 = vperm.slane %v159, 0
  %vm162 = vcmp.lt.f32.partialorder %v161, %v129
  %vm163 = vcmp.eq.f32.partialorder %v161, %v129
  %vm164 = vcmp.lt.s32.totalorder %v157, %v127
  %vm165 = vmand %vm163, %vm164
  %vm166 = vmor %vm162, %vm165
  %vm167 = vmand %vm160, %vm166
  %v168 = vsel %vm167, 1, 0
  %v169 = vcvt.s32.f32 %v168
  %vm170 = vcmask 64512
  %v171 = vsel %vm170, %v169, 0.0
  %172 = vadd.xlane.f32.xlu0 %v171
  %v173 = vpop.xlane.xlu0 %172
  %vm174 = vcmp.lt.f32.partialorder %v173, 4.0
  %v175 = vsel %vm174, 1, 0
  %v176 = vcvt.s32.f32 %v175
  %vm177 = vcmask 7168
  %178 = vst.msk [vmem:[%s6] sm:$0xff] %vm177, %v176
  %v179 = vld [vmem:[%s5] sm:$0xff]
  %v180 = vrot.slane %v179, 1
  %vm181 = vcmp.gt.f32.partialorder %v176, 0.0
  %v182 = vmin.f32 %v179, %v180
  %v183 = vsel %vm181, %v179, %v182
  %184 = vst.msk [vmem:[%s7] sm:$0xff] %vm177, %v183
  %v185 = vrot.slane %v27, 1
  %v186 = vadd.f32 %v27, %v185
  %v187 = vmul.f32 %v186, 0.5
  %v188 = vsel %vm181, 1, 0
  %vm189 = vcmp.eq.s32.totalorder %v188, 1
  %v190 = vsel %vm189, %v27, %v187
  %v191 = vmul.f32 %v190, %v190
  %v192 = vsel %vm65, %v191, 0.0
  %193 = vadd.xlane.f32.xlu0 %v192
  %v194 = vpop.xlane.xlu0 %193
  %v195 = vmax.f32 %v194, 1e-24
  %v196 = vrsqrt.pop %v195
  %v197 = vmul.f32 %v196, %v195
  %v198 = vmul.f32 %v197, %v196
  %v199 = vmul.f32 0.5, %v198
  %v200 = vsub.f32 1.5, %v199
  %v201 = vmul.f32 %v196, %v200
  %vm202 = vweird.f32 %v195
  %vm203 = vweird.f32 %v196
  %vm204 = vmor %vm202, %vm203
  %v205 = vsel %vm204, %v196, %v201
  %v206 = vmul.f32 %v190, %v205
  %v208 = vsel %vm65, %v206, 0
  %210 = vmatpush.xpose.msra.mxu0 0.0
  %211 = vmatpush.xpose.msra.mxu0 0.0
  %212 = vmatpush.xpose.msra.mxu0 0.0
  %213 = vmatpush.xpose.msra.mxu0 0.0
  %214 = vmatpush.xpose.msra.mxu0 0.0
  %215 = vmatpush.xpose.msra.mxu0 0.0
  %216 = vmatpush.xpose.msra.mxu0 0.0
  %217 = vmatpush.xpose.msra.mxu0 0.0
  %218 = vmatpush.xpose.msra.mxu0 0.0
  %219 = vmatpush.xpose.msra.mxu0 0.0
  %220 = vmatpush.xpose.msra.mxu0 0.0
  %221 = vmatpush.xpose.msra.mxu0 0.0
  %222 = vmatpush.xpose.msra.mxu0 0.0
  %223 = vmatpush.xpose.msra.mxu0 0.0
  %224 = vmatpush.xpose.msra.mxu0 0.0
  %225 = vmatpush.xpose.msra.mxu0 %v208
  %226 = vmatmul.f32.gmra.mxu0 %v208
  %v227 = vpop.f32.mrf.mxu0
  %v228 = vadd.f32 0.0, %v227
  %229 = vdwg.mxu0
  %230 = vst.msk [vmem:[%s8] sm:$0xff] %vm170, %v228
  // Predicated region
  $region26: #{merge_forward.1} parent=0 // pred_check
    _
  $region27: #{merge_forward.1} parent=0 // pred_check_branch
    %232 = sbr.rel (0) target = $region29
  $region28: #{merge_forward.1} parent=0 // pred_region
    _
  $region29: #{merge_forward.1} parent=0 // pred_fallthru
    _
  // Predicated region
  $region30: #{merge_forward.1} parent=0 // pred_check
    _
  $region31: #{merge_forward.1} parent=0 // pred_check_branch
    %234 = sbr.rel (0) target = $region33
  $region32: #{merge_forward.1} parent=0 // pred_region
    _
  $region33: #{merge_forward.1} parent=0 // pred_fallthru
    _
  // Predicated region
  $region34: #{merge_forward.1} parent=0 // pred_check
    _
  $region35: #{merge_forward.1} parent=0 // pred_check_branch
    %236 = sbr.rel (0) target = $region37
  $region36: #{merge_forward.1} parent=0 // pred_region
    _
  $region37: #{merge_forward.1} parent=0 // pred_fallthru
    _
  // Predicated region
  $region38: #{merge_forward.1} parent=0 // pred_check
    _
  $region39: #{merge_forward.1} parent=0 // pred_check_branch
    %238 = sbr.rel (0) target = $region41
  $region40: #{merge_forward.1} parent=0 // pred_region
    _
  $region41: #{merge_forward.1} parent=0 // pred_fallthru
    _
  // Predicated region
  $region42: #{merge_forward.1} parent=0 // pred_check
    _
  $region43: #{merge_forward.1} parent=0 // pred_check_branch
    %240 = sbr.rel (0) target = $region45
  $region44: #{merge_forward.1} parent=0 // pred_region
    _
  $region45: #{merge_forward.1} parent=0 // pred_fallthru
    _
  // Predicated region
  $region46: #{merge_forward.1} parent=0 // pred_check
    _
  $region47: #{merge_forward.1} parent=0 // pred_check_branch
    %242 = sbr.rel (0) target = $region49
  $region48: #{merge_forward.1} parent=0 // pred_region
    _
  $region49: #{merge_forward.1} parent=0 // pred_fallthru
    _

</llo_original>
